<compile_context>
chip_gen: v5e
topology: v5e:2x2
jax: 0.10.0
libtpu: 0.0.40
codegen_flags: <defaults>
</compile_context>

<pallas_src>
import jax
import jax.numpy as jnp
from jax.experimental import pallas as pl
from jax.experimental.pallas import tpu as pltpu


def _round_up(n, m):
    return (n + m - 1) // m * m


def mlp_kernel(x_ref,
               w1_ref, b1_ref,
               w2_ref, b2_ref,
               w34_ref, b34_ref,
               o_ref):
    # Cast the f32 input tile to bf16 on the VPU (no extra HBM pass in the wrapper).
    x_bf = x_ref[...].astype(jnp.bfloat16)

    # Hidden layer 1: Linear + ReLU   (Dropout(0.0) == identity)
    h = jnp.dot(x_bf, w1_ref[...],
                preferred_element_type=jnp.float32) + b1_ref[...]
    h = jnp.maximum(h, 0.0)

    # Hidden layer 2: Linear + ReLU   (Dropout(0.0) == identity)
    h = jnp.dot(h.astype(jnp.bfloat16), w2_ref[...],
                preferred_element_type=jnp.float32) + b2_ref[...]
    h = jnp.maximum(h, 0.0)

    # Layers 3 + 4 folded into one affine map (no activation between them).
    h = jnp.dot(h.astype(jnp.bfloat16), w34_ref[...],
                preferred_element_type=jnp.float32) + b34_ref[...]

    # Sigmoid only on the real output columns (no lane padding anymore).
    o_ref[...] = jax.nn.sigmoid(h).astype(o_ref.dtype)


def _pick_tile_b(B, tile_b=None):
    if tile_b is None:
        # Scale with B; guarantee >= 2 balanced tiles for large batches (v7x has
        # 2 TensorCores) and cap at 4096 rows (amortizes ~0.35 us/step overhead
        # while keeping double-buffered x/out tiles well under the VMEM limit).
        tile_b = min(4096, _round_up(pl.cdiv(B, 2), 8))
    # Clamp: multiple of 8 (sublane), never larger than the (rounded-up) batch.
    tile_b = max(8, min(_round_up(tile_b, 8), _round_up(B, 8)))
    return tile_b


def simple_mlp_pallas(x, params, *, tile_b=None, out_dtype=None):
    """params = [(W1, b1), (W2, b2), (W3, b3), (W4, b4)] with W_i of shape (in, out)."""
    (w1, b1), (w2, b2), (w3, b3), (w4, b4) = params
    B, in_dim = x.shape
    out_dim = w4.shape[1]
    h1 = w1.shape[1]
    h2 = w2.shape[1]
    if out_dtype is None:
        out_dtype = x.dtype   # keep PyTorch-equivalent f32 output by default

    # ---- Algebraic fold of Linear3 -> Dropout(0) -> Linear4 (done in f32). ----
    w34 = w3 @ w4                      # (h2, out_dim)
    b34 = b3 @ w4 + b4                 # (1, out_dim)

    # ---- bf16 MXU operands (weights only; x is cast inside the kernel). ----
    w1_bf = w1.astype(jnp.bfloat16)
    w2_bf = w2.astype(jnp.bfloat16)
    w34_bf = w34.astype(jnp.bfloat16)
    b1_f = b1.astype(jnp.float32)
    b2_f = b2.astype(jnp.float32)
    b34_f = b34.astype(jnp.float32)

    # ---- Ragged batch tiling (no jnp.pad of x, no output slicing). ----
    tile_b = _pick_tile_b(B, tile_b)
    grid = (pl.cdiv(B, tile_b),)

    def resident(shape):
        # Full-array block, constant index_map -> DMA'd once, stays VMEM-resident.
        return pl.BlockSpec(shape, lambda i: (0, 0))

    out = pl.pallas_call(
        mlp_kernel,
        out_shape=jax.ShapeDtypeStruct((B, out_dim), out_dtype),
        grid=grid,
        in_specs=[
            pl.BlockSpec((tile_b, in_dim), lambda i: (i, 0)),   # x tile (pipelined)
            resident((in_dim, h1)), resident((1, h1)),
            resident((h1, h2)),     resident((1, h2)),
            resident((h2, out_dim)), resident((1, out_dim)),
        ],
        out_specs=pl.BlockSpec((tile_b, out_dim), lambda i: (i, 0)),
        compiler_params=pltpu.CompilerParams(
            dimension_semantics=("parallel",),        # shard batch tiles across TCs (v7x)
            vmem_limit_bytes=32 * 1024 * 1024,        # guardrail; usage is far below this
        ),
    )(x, w1_bf, b1_f, w2_bf, b2_f, w34_bf, b34_f)

    return out


def init_params(key, in_channels, hidden_channels):
    """Deterministic init mirroring the shapes created by simpleMLP.__init__.

    Layers: Linear(in, h0), ..., Linear(h_{n-2}, h_{n-1}), Linear(h_{n-1}, h_{n-1}).
    Weights returned transposed to (in, out) for the kernel.
    """
    dims = [in_channels] + list(hidden_channels) + [hidden_channels[-1]]
    params = []
    for i in range(len(dims) - 1):
        key, kw, kb = jax.random.split(key, 3)
        fan_in, fan_out = dims[i], dims[i + 1]
        bound = 1.0 / jnp.sqrt(fan_in)
        w = jax.random.uniform(kw, (fan_in, fan_out), jnp.float32, -bound, bound)
        b = jax.random.uniform(kb, (1, fan_out), jnp.float32, -bound, bound)
        params.append((w, b))
    return params


def reference_forward_f32(x, params):
    """Pure-f32 JAX reference matching the PyTorch forward semantics."""
    (w1, b1), (w2, b2), (w3, b3), (w4, b4) = params
    h = jnp.maximum(x @ w1 + b1, 0.0)
    h = jnp.maximum(h @ w2 + b2, 0.0)
    h = h @ w3 + b3
    h = h @ w4 + b4
    return jax.nn.sigmoid(h)


def reference_forward_matched(x, params):
    """Reference doing exactly the kernel math (layer fold + bf16 operands, f32 acc)."""
    (w1, b1), (w2, b2), (w3, b3), (w4, b4) = params
    w34 = (w3 @ w4).astype(jnp.bfloat16)
    b34 = b3 @ w4 + b4
    h = jnp.dot(x.astype(jnp.bfloat16), w1.astype(jnp.bfloat16),
                preferred_element_type=jnp.float32) + b1
    h = jnp.maximum(h, 0.0)
    h = jnp.dot(h.astype(jnp.bfloat16), w2.astype(jnp.bfloat16),
                preferred_element_type=jnp.float32) + b2
    h = jnp.maximum(h, 0.0)
    h = jnp.dot(h.astype(jnp.bfloat16), w34,
                preferred_element_type=jnp.float32) + b34
    return jax.nn.sigmoid(h)


if __name__ == "__main__":
    # Small shapes consistent with the module:
    #   simpleMLP(in_channels=32, hidden_channels=[64, 48, 16])
    batch = 8
    in_channels = 32
    hidden_channels = [64, 48, 16]

    key = jax.random.PRNGKey(0)
    key, kx = jax.random.split(key)
    x = jax.random.normal(kx, (batch, in_channels), jnp.float32)
    params = init_params(key, in_channels, hidden_channels)

    out = simple_mlp_pallas(x, params)
    out = jax.block_until_ready(out)
    assert out.shape == (batch, hidden_channels[-1])
    assert out.dtype == jnp.float32

    # Tight check against a reference with identical math (fold + bf16 operands).
    ref_matched = reference_forward_matched(x, params)
    assert jnp.allclose(out, ref_matched, atol=1e-5, rtol=1e-5), "mismatch vs matched reference"

    # Loose check against the pure-f32 PyTorch-equivalent forward
    # (bf16 MXU operands + W3@W4 fold change results at float-rounding level).
    ref_f32 = reference_forward_f32(x, params)
    assert jnp.allclose(out, ref_f32, atol=3e-2, rtol=3e-2), "mismatch vs f32 reference"

    print("KERNEL_OK")
</pallas_src>

<mosaic_0001>
module attributes {stable_mosaic.version = 11 : i64} {
  func.func @mlp_kernel(%arg0: i32, %arg1: memref<8x32xf32, #tpu.memory_space<vmem>>, %arg2: memref<32x64xbf16, #tpu.memory_space<vmem>>, %arg3: memref<1x64xf32, #tpu.memory_space<vmem>>, %arg4: memref<64x48xbf16, #tpu.memory_space<vmem>>, %arg5: memref<1x48xf32, #tpu.memory_space<vmem>>, %arg6: memref<48x16xbf16, #tpu.memory_space<vmem>>, %arg7: memref<1x16xf32, #tpu.memory_space<vmem>>, %arg8: memref<8x16xf32, #tpu.memory_space<vmem>>) attributes {dimension_semantics = [#tpu.dimension_semantics<parallel>], iteration_bounds = array<i64: 1>, scalar_prefetch = 0 : i64, scratch_operands = 0 : i64, tpu.core_type = #tpu.core_type<tc>, window_params = [{transform_indices = @transform_0, window_bounds = array<i64: 8, 32>}, {pipeline_mode = #tpu.pipeline_mode<synchronous>, transform_indices = @transform_1, window_bounds = array<i64: 32, 64>}, {pipeline_mode = #tpu.pipeline_mode<synchronous>, transform_indices = @transform_2, window_bounds = array<i64: 1, 64>}, {pipeline_mode = #tpu.pipeline_mode<synchronous>, transform_indices = @transform_3, window_bounds = array<i64: 64, 48>}, {pipeline_mode = #tpu.pipeline_mode<synchronous>, transform_indices = @transform_4, window_bounds = array<i64: 1, 48>}, {pipeline_mode = #tpu.pipeline_mode<synchronous>, transform_indices = @transform_5, window_bounds = array<i64: 48, 16>}, {pipeline_mode = #tpu.pipeline_mode<synchronous>, transform_indices = @transform_6, window_bounds = array<i64: 1, 16>}, {transform_indices = @transform_7, window_bounds = array<i64: 8, 16>}]} {
    %c0 = arith.constant 0 : index
    %c0_0 = arith.constant 0 : index
    %0 = vector.load %arg1[%c0, %c0_0] : memref<8x32xf32, #tpu.memory_space<vmem>>, vector<8x32xf32>
    %1 = arith.truncf %0 : vector<8x32xf32> to vector<8x32xbf16>
    %c0_1 = arith.constant 0 : index
    %c0_2 = arith.constant 0 : index
    %2 = vector.load %arg2[%c0_1, %c0_2] : memref<32x64xbf16, #tpu.memory_space<vmem>>, vector<32x64xbf16>
    %cst = arith.constant dense<0.000000e+00> : vector<8x64xf32>
    %3 = tpu.matmul %1, %2, %cst {dimension_numbers = #tpu.dot_dimension_numbers<[1], [0], [0], [1], [0, 0, 1, 1], [], []>} : vector<8x32xbf16>, vector<32x64xbf16>, vector<8x64xf32> -> vector<8x64xf32>
    %c0_3 = arith.constant 0 : index
    %c0_4 = arith.constant 0 : index
    %4 = vector.load %arg3[%c0_3, %c0_4] : memref<1x64xf32, #tpu.memory_space<vmem>>, vector<1x64xf32>
    %5 = vector.broadcast %4 : vector<1x64xf32> to vector<8x64xf32>
    %6 = arith.addf %3, %5 : vector<8x64xf32>
    %cst_5 = arith.constant 0.000000e+00 : f32
    %7 = vector.broadcast %cst_5 : f32 to vector<8x64xf32>
    %8 = arith.maximumf %6, %7 : vector<8x64xf32>
    %9 = arith.truncf %8 : vector<8x64xf32> to vector<8x64xbf16>
    %c0_6 = arith.constant 0 : index
    %c0_7 = arith.constant 0 : index
    %10 = vector.load %arg4[%c0_6, %c0_7] : memref<64x48xbf16, #tpu.memory_space<vmem>>, vector<64x48xbf16>
    %cst_8 = arith.constant dense<0.000000e+00> : vector<8x48xf32>
    %11 = tpu.matmul %9, %10, %cst_8 {dimension_numbers = #tpu.dot_dimension_numbers<[1], [0], [0], [1], [0, 0, 1, 1], [], []>} : vector<8x64xbf16>, vector<64x48xbf16>, vector<8x48xf32> -> vector<8x48xf32>
    %c0_9 = arith.constant 0 : index
    %c0_10 = arith.constant 0 : index
    %12 = vector.load %arg5[%c0_9, %c0_10] : memref<1x48xf32, #tpu.memory_space<vmem>>, vector<1x48xf32>
    %13 = vector.broadcast %12 : vector<1x48xf32> to vector<8x48xf32>
    %14 = arith.addf %11, %13 : vector<8x48xf32>
    %cst_11 = arith.constant 0.000000e+00 : f32
    %15 = vector.broadcast %cst_11 : f32 to vector<8x48xf32>
    %16 = arith.maximumf %14, %15 : vector<8x48xf32>
    %17 = arith.truncf %16 : vector<8x48xf32> to vector<8x48xbf16>
    %c0_12 = arith.constant 0 : index
    %c0_13 = arith.constant 0 : index
    %18 = vector.load %arg6[%c0_12, %c0_13] : memref<48x16xbf16, #tpu.memory_space<vmem>>, vector<48x16xbf16>
    %cst_14 = arith.constant dense<0.000000e+00> : vector<8x16xf32>
    %19 = tpu.matmul %17, %18, %cst_14 {dimension_numbers = #tpu.dot_dimension_numbers<[1], [0], [0], [1], [0, 0, 1, 1], [], []>} : vector<8x48xbf16>, vector<48x16xbf16>, vector<8x16xf32> -> vector<8x16xf32>
    %c0_15 = arith.constant 0 : index
    %c0_16 = arith.constant 0 : index
    %20 = vector.load %arg7[%c0_15, %c0_16] : memref<1x16xf32, #tpu.memory_space<vmem>>, vector<1x16xf32>
    %21 = vector.broadcast %20 : vector<1x16xf32> to vector<8x16xf32>
    %22 = arith.addf %19, %21 : vector<8x16xf32>
    %23 = arith.negf %22 : vector<8x16xf32>
    %24 = math.exp %23 : vector<8x16xf32>
    %cst_17 = arith.constant 1.000000e+00 : f32
    %25 = vector.broadcast %cst_17 : f32 to vector<8x16xf32>
    %26 = arith.addf %25, %24 : vector<8x16xf32>
    %27 = arith.divf %25, %26 : vector<8x16xf32>
    %c0_18 = arith.constant 0 : index
    %c0_19 = arith.constant 0 : index
    %28 = vector.load %arg8[%c0_18, %c0_19] : memref<8x16xf32, #tpu.memory_space<vmem>>, vector<8x16xf32>
    tpu.vector_store %arg8[%c0_18, %c0_19], %27 {strides = array<i32>} : memref<8x16xf32, #tpu.memory_space<vmem>>, vector<8x16xf32>,
    return
  }
  func.func @transform_0(%arg0: i32) -> (i32, i32) {
    %c0_i32 = arith.constant 0 : i32
    %c0_i32_0 = arith.constant 0 : i32
    return %arg0, %c0_i32 : i32, i32
  }
  func.func @transform_1(%arg0: i32) -> (i32, i32) {
    %c0_i32 = arith.constant 0 : i32
    %c0_i32_0 = arith.constant 0 : i32
    %c0_i32_1 = arith.constant 0 : i32
    return %c0_i32, %c0_i32_0 : i32, i32
  }
  func.func @transform_2(%arg0: i32) -> (i32, i32) {
    %c0_i32 = arith.constant 0 : i32
    %c0_i32_0 = arith.constant 0 : i32
    %c0_i32_1 = arith.constant 0 : i32
    return %c0_i32, %c0_i32_0 : i32, i32
  }
  func.func @transform_3(%arg0: i32) -> (i32, i32) {
    %c0_i32 = arith.constant 0 : i32
    %c0_i32_0 = arith.constant 0 : i32
    %c0_i32_1 = arith.constant 0 : i32
    return %c0_i32, %c0_i32_0 : i32, i32
  }
  func.func @transform_4(%arg0: i32) -> (i32, i32) {
    %c0_i32 = arith.constant 0 : i32
    %c0_i32_0 = arith.constant 0 : i32
    %c0_i32_1 = arith.constant 0 : i32
    return %c0_i32, %c0_i32_0 : i32, i32
  }
  func.func @transform_5(%arg0: i32) -> (i32, i32) {
    %c0_i32 = arith.constant 0 : i32
    %c0_i32_0 = arith.constant 0 : i32
    %c0_i32_1 = arith.constant 0 : i32
    return %c0_i32, %c0_i32_0 : i32, i32
  }
  func.func @transform_6(%arg0: i32) -> (i32, i32) {
    %c0_i32 = arith.constant 0 : i32
    %c0_i32_0 = arith.constant 0 : i32
    %c0_i32_1 = arith.constant 0 : i32
    return %c0_i32, %c0_i32_0 : i32, i32
  }
  func.func @transform_7(%arg0: i32) -> (i32, i32) {
    %c0_i32 = arith.constant 0 : i32
    %c0_i32_0 = arith.constant 0 : i32
    return %arg0, %c0_i32 : i32, i32
  }
}

</mosaic_0001>

<llo_original>
// kernel: tpu_custom_call.1
$region0: #{tpu_custom_call.1}
  #allocation0 [shape = 'u32[]', space=smem, size = 0x4, offset = 0x4, fixed_abs, tag = 'smem constant byte address 0x4 - core index']
  #allocation1 [shape = 'u32[72,128]{1,0:T(1,128)}', space=vmem, size = 0x9000, scoped, tag = 'internal scratch']
  %s0 = inlined_call_operand.vmem [shape: f32[8,32], index: 0, kind: input, shape index: {}]
  %s1 = inlined_call_operand.vmem [shape: bf16[32,64], index: 1, kind: input, shape index: {}]
  %s2 = inlined_call_operand.vmem [shape: f32[1,64], index: 2, kind: input, shape index: {}]
  %s3 = inlined_call_operand.vmem [shape: bf16[64,48], index: 3, kind: input, shape index: {}]
  %s4 = inlined_call_operand.vmem [shape: f32[1,48], index: 4, kind: input, shape index: {}]
  %s5 = inlined_call_operand.vmem [shape: bf16[48,16], index: 5, kind: input, shape index: {}]
  %s6 = inlined_call_operand.vmem [shape: f32[1,16], index: 6, kind: input, shape index: {}]
  %s7 = inlined_call_operand.hbm [shape: f32[8,16], index: 7, kind: output, shape index: {}]
  %s8 = sld [smem:[#allocation0]]
  $region38: #{tpu_custom_call.1} parent=0
    _
  %s10 = ssub.s32 1, %s8
  %s11 = scalar_select 0, %s10, %s8
  $region1: #{tpu_custom_call.1} parent=0
    #allocation2 [shape = 'u8[4096]{0}', space=vmem, size = 0x1000, scoped, tag = 'output window, operand 0, single buffered']
    #allocation3 [shape = 's32[1]{0}', space=sflag, size = 0x4, scoped, tag = 'scoped memory for tpu_custom_call.1']
    %12 = vsyncpa [#allocation3], 0
    // Predicated region
    $region2: #{tpu_custom_call.1} parent=1 // pred_check
      _
    $region3: #{tpu_custom_call.1} parent=1 // pred_check_branch
      %14 = sbr.rel (0) target = $region5
    $region4: #{tpu_custom_call.1} parent=1 // pred_region
      _
    $region5: #{tpu_custom_call.1} parent=1 // pred_fallthru
      _
    // Predicated region
    $region6: #{tpu_custom_call.1} parent=1 // pred_check
      _
    $region7: #{tpu_custom_call.1} parent=1 // pred_check_branch
      %16 = sbr.rel (0) target = $region9
    $region8: #{tpu_custom_call.1} parent=1 // pred_region
      _
    $region9: #{tpu_custom_call.1} parent=1 // pred_fallthru
      _
    // Predicated region
    $region10: #{tpu_custom_call.1} parent=1 // pred_check
      _
    $region11: #{tpu_custom_call.1} parent=1 // pred_check_branch
      %18 = sbr.rel (0) target = $region13
    $region12: #{tpu_custom_call.1} parent=1 // pred_region
      _
    $region13: #{tpu_custom_call.1} parent=1 // pred_fallthru
      _
    // Predicated region
    $region14: #{tpu_custom_call.1} parent=1 // pred_check
      _
    $region15: #{tpu_custom_call.1} parent=1 // pred_check_branch
      %20 = sbr.rel (0) target = $region17
    $region16: #{tpu_custom_call.1} parent=1 // pred_region
      _
    $region17: #{tpu_custom_call.1} parent=1 // pred_fallthru
      _
    // Predicated region
    $region18: #{tpu_custom_call.1} parent=1 // pred_check
      _
    $region19: #{tpu_custom_call.1} parent=1 // pred_check_branch
      %22 = sbr.rel (0) target = $region21
    $region20: #{tpu_custom_call.1} parent=1 // pred_region
      _
    $region21: #{tpu_custom_call.1} parent=1 // pred_fallthru
      _
    // Predicated region
    $region22: #{tpu_custom_call.1} parent=1 // pred_check
      _
    $region23: #{tpu_custom_call.1} parent=1 // pred_check_branch
      %24 = sbr.rel (0) target = $region25
    $region24: #{tpu_custom_call.1} parent=1 // pred_region
      _
    $region25: #{tpu_custom_call.1} parent=1 // pred_fallthru
      _
    // Predicated region
    $region26: #{tpu_custom_call.1} parent=1 // pred_check
      _
    $region27: #{tpu_custom_call.1} parent=1 // pred_check_branch
      %26 = sbr.rel (0) target = $region29
    $region28: #{tpu_custom_call.1} parent=1 // pred_region
      _
    $region29: #{tpu_custom_call.1} parent=1 // pred_fallthru
      _
    %v28 = vld [vmem:[%s0] sm:$0xff]
    %v29 = vpack.c.bf16 %v28, %v28
    %v30 = vld [vmem:[%s1] sm:$0xf]
    %v31 = vld [vmem:[%s1 + $0x4] sm:$0xf]
    %v32 = vld [vmem:[%s1 + $0x8] sm:$0xf]
    %v33 = vld [vmem:[%s1 + $0xc] sm:$0xf]
    %v34 = vld [vmem:[%s2] sm:$0x1]
    %v36 = vperm.slane %v34, 0
    %v42 = vunpack.c.l.b16 %v30
    %v43 = vunpack.c.l.b16 %v31
    %v44 = vunpack.c.l.b16 %v32
    %v45 = vunpack.c.l.b16 %v33
    %v46 = vpack.c.b16 %v43, %v42
    %v47 = vpack.c.b16 %v45, %v44
    %vm50 = vcmask 261120
    %v52 = vsel %vm50, %v29, 0
    %54 = vmatpush.bf16.msra.mxu0 0
    %55 = vmatpush.bf16.msra.mxu0 0
    %56 = vmatpush.bf16.msra.mxu0 0
    %57 = vmatpush.bf16.msra.mxu0 0
    %58 = vmatpush.bf16.msra.mxu0 0
    %59 = vmatpush.bf16.msra.mxu0 0
    %60 = vmatpush.bf16.msra.mxu0 %v47
    %61 = vmatpush.bf16.msra.mxu0 %v46
    %62 = vmatmul.bf16.gmra.mxu0 %v52
    %v63 = vpop.f32.mrf.mxu0
    %v64 = vadd.f32 %v36, %v63
    %v65 = vpop.f32.mrf.mxu0
    %66 = vdwg.mxu0
    %v67 = vmax.f32 %v64, 0.0
    %v68 = vpack.c.bf16 %v67, %v67
    %v69 = vld [vmem:[%s3] sm:$0xf]
    %v70 = vld [vmem:[%s3 + $0x4] sm:$0xf]
    %v71 = vld [vmem:[%s3 + $0x8] sm:$0xf]
    %v72 = vld [vmem:[%s3 + $0xc] sm:$0xf]
    %v73 = vld [vmem:[%s3 + $0x10] sm:$0xf]
    %v74 = vld [vmem:[%s3 + $0x14] sm:$0xf]
    %v75 = vld [vmem:[%s3 + $0x18] sm:$0xf]
    %v76 = vld [vmem:[%s3 + $0x1c] sm:$0xf]
    %v77 = vld [vmem:[%s4] sm:$0x1]
    %v79 = vperm.slane %v77, 0
    %v89 = vunpack.c.l.b16 %v69
    %v90 = vunpack.c.l.b16 %v70
    %v91 = vunpack.c.l.b16 %v71
    %v92 = vunpack.c.l.b16 %v72
    %v93 = vunpack.c.l.b16 %v73
    %v94 = vunpack.c.l.b16 %v74
    %v95 = vunpack.c.l.b16 %v75
    %v96 = vunpack.c.l.b16 %v76
    %v97 = vpack.c.b16 %v90, %v89
    %v98 = vpack.c.b16 %v92, %v91
    %v99 = vpack.c.b16 %v94, %v93
    %v100 = vpack.c.b16 %v96, %v95
    %vm105 = vcmask 523264
    %v107 = vsel %vm105, %v68, 0
    %109 = vmatpush.bf16.msra.mxu0 0
    %110 = vmatpush.bf16.msra.mxu0 0
    %111 = vmatpush.bf16.msra.mxu0 0
    %112 = vmatpush.bf16.msra.mxu0 0
    %113 = vmatpush.bf16.msra.mxu0 %v100
    %114 = vmatpush.bf16.msra.mxu0 %v99
    %115 = vmatpush.bf16.msra.mxu0 %v98
    %116 = vmatpush.bf16.msra.mxu0 %v97
    %117 = vmatmul.bf16.gmra.mxu0 %v107
    %v118 = vpop.f32.mrf.mxu0
    %v119 = vadd.f32 %v79, %v118
    %v120 = vpop.f32.mrf.mxu0
    %121 = vdwg.mxu0
    %v122 = vmax.f32 %v119, 0.0
    %v123 = vpack.c.bf16 %v122, %v122
    %v124 = vld [vmem:[%s5] sm:$0xf]
    %v125 = vld [vmem:[%s5 + $0x4] sm:$0xf]
    %v126 = vld [vmem:[%s5 + $0x8] sm:$0xf]
    %v127 = vld [vmem:[%s5 + $0xc] sm:$0xf]
    %v128 = vld [vmem:[%s5 + $0x10] sm:$0xf]
    %v129 = vld [vmem:[%s5 + $0x14] sm:$0xf]
    %v130 = vld [vmem:[%s6] sm:$0x1]
    %v132 = vperm.slane %v130, 0
    %v140 = vunpack.c.l.b16 %v124
    %v141 = vunpack.c.l.b16 %v125
    %v142 = vunpack.c.l.b16 %v126
    %v143 = vunpack.c.l.b16 %v127
    %v144 = vunpack.c.l.b16 %v128
    %v145 = vunpack.c.l.b16 %v129
    %v146 = vpack.c.b16 %v141, %v140
    %v147 = vpack.c.b16 %v143, %v142
    %v148 = vpack.c.b16 %v145, %v144
    %vm152 = vcmask 392192
    %v154 = vsel %vm152, %v123, 0
    %156 = vmatpush.bf16.msra.mxu0 0
    %157 = vmatpush.bf16.msra.mxu0 0
    %158 = vmatpush.bf16.msra.mxu0 0
    %159 = vmatpush.bf16.msra.mxu0 0
    %160 = vmatpush.bf16.msra.mxu0 0
    %161 = vmatpush.bf16.msra.mxu0 %v148
    %162 = vmatpush.bf16.msra.mxu0 %v147
    %163 = vmatpush.bf16.msra.mxu0 %v146
    %164 = vmatmul.bf16.gmra.mxu0 %v154
    %v165 = vpop.f32.mrf.mxu0
    %v166 = vadd.f32 %v132, %v165
    %v167 = vpop.f32.mrf.mxu0
    %168 = vdwg.mxu0
    %v169 = vxor.u32 %v166, 2147483648
    %v170 = vmul.f32 %v169, 1.442695
    %v171 = vpow.pop %v170
    %v172 = vadd.f32 %v171, 1.0
    %v173 = vrcp.pop %v172
    %v174 = vmul.f32 %v172, %v173
    %v175 = vsub.f32 1.0, %v174
    %v176 = vmul.f32 %v173, %v175
    %v177 = vadd.f32 %v173, %v176
    %vm178 = vweird.f32 %v172
    %vm179 = vweird.f32 %v173
    %vm180 = vmor %vm178, %vm179
    %v181 = vsel %vm180, %v173, %v177
    %v182 = vand.u32 2147483647, %v172
    %vm183 = vcmp.eq.f32.partialorder %v182, 8.507059e+37
    %v184 = vand.u32 %v172, 2147483648
    %v185 = vor.u32 1.1754944e-38, %v184
    %v186 = vsel %vm183, %v185, %v181
    %v187 = vmul.f32 1.0, %v186
    %vm188 = vcmask 130048
    %189 = vst.msk [vmem:[#allocation2] sm:$0xff] %vm188, %v187
    // Predicated region
    $region30: #{tpu_custom_call.1} parent=1 // pred_check
      _
    $region31: #{tpu_custom_call.1} parent=1 // pred_check_branch
      %191 = sbr.rel (0) target = $region33
    $region32: #{tpu_custom_call.1} parent=1 // pred_region
      %193 = vsyncadd [#allocation3], 0
      %s195 = sshll.u32 [#allocation2], 4
      %s196 = int_to_ptr.vmem [resolvable:$true] %s195
      %s197 = sshll.u32 %s7, 4
      %s198 = int_to_ptr.hbm [resolvable:$true] %s197
      %200 = dma.vmem_to_hbm [thread:$0]  %s196, 128, %s198, [#allocation3]
    $region33: #{tpu_custom_call.1} parent=1 // pred_fallthru
      _
    // Predicated region
    $region34: #{tpu_custom_call.1} parent=1 // pred_check
      _
    $region35: #{tpu_custom_call.1} parent=1 // pred_check_branch
      %202 = sbr.rel (0) target = $region37
    $region36: #{tpu_custom_call.1} parent=1 // pred_region
      %204 = dma.done [#allocation3], 128
    $region37: #{tpu_custom_call.1} parent=1 // pred_fallthru
      _
    %205 = vsyncpa [#allocation3], 1

</llo_original>
